<compile_context>
chip_gen: v7x
topology: tpu7x:2x2x1
jax: 0.10.0
libtpu: 0.0.40
codegen_flags: <defaults>
</compile_context>

<pallas_src>
import math

import jax
import jax.numpy as jnp
from jax.experimental import pallas as pl
from jax.experimental.pallas import tpu as pltpu

LANE = 128  # padded hidden width (native lane count)


def varnet_kernel(x_ref,
                  w0_ref, b0_ref,
                  w1_ref, b1_ref,
                  w2_ref, b2_ref,
                  w3_ref, b3_ref,
                  o_ref):
    """Fused forward for one batch tile: 4 bf16 MXU matmuls + VPU/EUP epilogues."""
    tile_b = x_ref.shape[0]

    # hidden0: Linear(F, ndf->128 padded) + LeakyReLU(0.2)   (Dropout = identity)
    h = jnp.dot(x_ref[...].astype(jnp.bfloat16), w0_ref[...],
                preferred_element_type=jnp.float32) + b0_ref[...]
    h = jnp.maximum(h, 0.2 * h)

    # hidden1: Linear(128, 128) + LeakyReLU(0.2)
    h = jnp.dot(h.astype(jnp.bfloat16), w1_ref[...],
                preferred_element_type=jnp.float32) + b1_ref[...]
    h = jnp.maximum(h, 0.2 * h)

    # hidden2: Linear(128, 128) + LeakyReLU(0.2)
    h = jnp.dot(h.astype(jnp.bfloat16), w2_ref[...],
                preferred_element_type=jnp.float32) + b2_ref[...]
    h = jnp.maximum(h, 0.2 * h)

    # out: Linear(ndf//4, 1) + Sigmoid, produced lane-dense.
    # w3 is stored padded to (8, 128) (row 0 = real weights, rows 1..7 zero);
    # contracting both operands on their last dim gives a (8, tile_b) result on
    # the MXU whose row 0 is the logits ROW -> no column->row relayout needed.
    logits8 = jax.lax.dot_general(
        w3_ref[...], h.astype(jnp.bfloat16),
        dimension_numbers=(((1,), (1,)), ((), ())),
        preferred_element_type=jnp.float32)                  # (8, tile_b)
    logits = logits8[0:1, :] + b3_ref[0]                     # (1, tile_b)
    sig = pl.reciprocal(1.0 + jnp.exp(-logits), approx=True)  # EUP slot
    sig = jnp.clip(sig, 0.0, 1.0)                             # approx-recip guard
    o_ref[...] = sig.reshape(1, 1, tile_b).astype(o_ref.dtype)


def _round_up(n, m):
    return ((n + m - 1) // m) * m


def _choose_tile_b(B, *, max_tile=2048, target_steps=8):
    """Pick a batch tile: ~target_steps grid steps, multiple of 8 (128 when big),
    capped at max_tile. Gives v7x >= 3-4 steps per TensorCore when B allows."""
    tile = (B + target_steps - 1) // target_steps
    tile = _round_up(tile, 8)
    if tile > 128:
        tile = _round_up(tile, 128)
    return int(min(max(tile, 8), max_tile))


def varnet_forward(x, params, y=None, *, tile_b=None):
    """Batched-grid Pallas forward. `y` mirrors the (unused) PyTorch forward arg."""
    del y  # VARNet.forward ignores its second argument
    (w0, b0), (w1, b1), (w2, b2), (w3, b3) = params
    B, F = x.shape
    L = w0.shape[1]

    if tile_b is None:
        tile_b = _choose_tile_b(B)
    tile_b = max(8, _round_up(min(int(tile_b), _round_up(B, 8)), 8))
    Bp = _round_up(B, tile_b)
    if Bp != B:
        x = jnp.pad(x, ((0, Bp - B), (0, 0)))
    num_tiles = Bp // tile_b

    weight_args = (w0, b0, w1, b1, w2, b2, w3, b3)
    bytes_accessed = (Bp * F * x.dtype.itemsize + Bp * 4 +
                      sum(int(a.size) * a.dtype.itemsize for a in weight_args))
    cost = pl.CostEstimate(
        flops=2 * Bp * (F * L + 2 * L * L + L),
        transcendentals=2 * Bp,                      # exp + reciprocal per row
        bytes_accessed=bytes_accessed,
    )

    const = lambda i: (0, 0)  # weights/biases resident across the batch grid
    out = pl.pallas_call(
        varnet_kernel,
        out_shape=jax.ShapeDtypeStruct((num_tiles, 1, tile_b), jnp.float32),
        grid=(num_tiles,),
        in_specs=[
            # x: tiled over batch. If a profile on v5e shows the x DMA exposed,
            # add pipeline_mode=pl.Buffered(3) here.
            pl.BlockSpec((tile_b, F), lambda i: (i, 0)),
            pl.BlockSpec((F, L), const),                   # w0 (bf16)
            pl.BlockSpec((1, L), const),                   # b0 (f32)
            pl.BlockSpec((L, L), const),                   # w1 (bf16)
            pl.BlockSpec((1, L), const),                   # b1 (f32)
            pl.BlockSpec((L, L), const),                   # w2 (bf16)
            pl.BlockSpec((1, L), const),                   # b2 (f32)
            pl.BlockSpec((8, L), const),                   # w3 padded rows (bf16)
            pl.BlockSpec(memory_space=pltpu.MemorySpace.SMEM),  # b3 scalar in SMEM
        ],
        out_specs=pl.BlockSpec((1, 1, tile_b), lambda i: (i, 0, 0)),  # lane-dense
        compiler_params=pltpu.CompilerParams(
            dimension_semantics=("parallel",),
            vmem_limit_bytes=32 * 1024 * 1024,
        ),
        cost_estimate=cost,
    )(x, *weight_args)
    return out.reshape(Bp, 1)[:B]


def init_varnet_params(key, n_features, ndf, pack_num=1,
                       lane=LANE, weight_dtype=jnp.bfloat16):
    """PyTorch-Linear-style init; weights stored (in, out), zero-padded to 128 lanes,
    weights quantized to bf16 (f32 biases). Padding is numerically exact."""
    f_in = n_features * pack_num
    dims = [(f_in, ndf), (ndf, ndf // 2), (ndf // 2, ndf // 4), (ndf // 4, 1)]
    raw = []
    for fan_in, fan_out in dims:
        key, kw, kb = jax.random.split(key, 3)
        bound = 1.0 / math.sqrt(fan_in)
        w = jax.random.uniform(kw, (fan_in, fan_out), jnp.float32, -bound, bound)
        b = jax.random.uniform(kb, (fan_out,), jnp.float32, -bound, bound)
        raw.append((w, b))

    def pad2(w, rows, cols):
        return jnp.pad(w, ((0, rows - w.shape[0]), (0, cols - w.shape[1])))

    (w0, b0), (w1, b1), (w2, b2), (w3, b3) = raw
    w0p = pad2(w0, f_in, lane).astype(weight_dtype)
    b0p = jnp.pad(b0, (0, lane - b0.shape[0])).reshape(1, lane)
    w1p = pad2(w1, lane, lane).astype(weight_dtype)
    b1p = jnp.pad(b1, (0, lane - b1.shape[0])).reshape(1, lane)
    w2p = pad2(w2, lane, lane).astype(weight_dtype)
    b2p = jnp.pad(b2, (0, lane - b2.shape[0])).reshape(1, lane)
    # Final layer stored as a (8, lane) block: row 0 = real weights, rows 1..7 zero,
    # so the in-kernel row-matmul has a well-formed (>=8 sublane) LHS.
    w3p = (jnp.zeros((8, lane), jnp.float32)
           .at[0, :w3.shape[0]].set(w3[:, 0])
           .astype(weight_dtype))
    b3p = b3.reshape(1).astype(jnp.float32)  # scalar, lives in SMEM
    return ((w0p, b0p), (w1p, b1p), (w2p, b2p), (w3p, b3p))


def varnet_reference(x, params):
    """Pure-JAX f32 reference on the same (padded, bf16-stored) parameters."""
    (w0, b0), (w1, b1), (w2, b2), (w3, b3) = params
    h = x.astype(jnp.float32)
    for w, b in ((w0, b0), (w1, b1), (w2, b2)):
        h = jnp.dot(h, w.astype(jnp.float32),
                    precision=jax.lax.Precision.HIGHEST) + b
        h = jnp.maximum(h, 0.2 * h)
    logits = jnp.dot(h, w3.astype(jnp.float32)[0]) + b3[0]   # (B,)
    return jax.nn.sigmoid(logits)[:, None]


# TODO(synk): Dropout(0.3) is identity here (eval semantics); training-mode parity
# would need pltpu.prng_seed / pltpu.prng_random_bits masking.
# TODO(synk): the minibatch=True branch (minibatch discrimination layer) is not
# implemented; the default module config (minibatch=False) does not use it.


if __name__ == "__main__":
    n_features, ndf, pack_num = 32, 32, 1
    batch = 1024  # -> tile 128, grid (8,): exercises the pipelined "parallel" grid

    key = jax.random.PRNGKey(0)
    key, kx, ky = jax.random.split(key, 3)
    x = jax.random.normal(kx, (batch, n_features * pack_num), jnp.float32)
    y = jax.random.normal(ky, (batch, n_features * pack_num), jnp.float32)  # unused by forward

    params = init_varnet_params(jax.random.PRNGKey(0), n_features, ndf, pack_num)

    out = jax.block_until_ready(varnet_forward(x, params, y))
    ref = varnet_reference(x, params)

    assert out.shape == (batch, 1), out.shape
    assert bool(jnp.all(jnp.isfinite(out)))
    # Tolerance covers bf16 activation rounding + MXU accumulation order +
    # approx-reciprocal sigmoid.
    assert jnp.allclose(out, ref, atol=2e-2, rtol=2e-2), float(jnp.max(jnp.abs(out - ref)))

    print("KERNEL_OK")
</pallas_src>

<mosaic_0001>
module attributes {stable_mosaic.version = 11 : i64} {
  func.func @varnet_kernel(%arg0: i32, %arg1: memref<128x32xf32, #tpu.memory_space<vmem>>, %arg2: memref<32x128xbf16, #tpu.memory_space<vmem>>, %arg3: memref<1x128xf32, #tpu.memory_space<vmem>>, %arg4: memref<128x128xbf16, #tpu.memory_space<vmem>>, %arg5: memref<1x128xf32, #tpu.memory_space<vmem>>, %arg6: memref<128x128xbf16, #tpu.memory_space<vmem>>, %arg7: memref<1x128xf32, #tpu.memory_space<vmem>>, %arg8: memref<8x128xbf16, #tpu.memory_space<vmem>>, %arg9: memref<1xf32, #tpu.memory_space<smem>>, %arg10: memref<1x1x128xf32, #tpu.memory_space<vmem>>) attributes {dimension_semantics = [#tpu.dimension_semantics<parallel>], iteration_bounds = array<i64: 8>, scalar_prefetch = 0 : i64, scratch_operands = 0 : i64, tpu.core_type = #tpu.core_type<tc>, window_params = [{transform_indices = @transform_0, window_bounds = array<i64: 128, 32>}, {pipeline_mode = #tpu.pipeline_mode<synchronous>, transform_indices = @transform_1, window_bounds = array<i64: 32, 128>}, {pipeline_mode = #tpu.pipeline_mode<synchronous>, transform_indices = @transform_2, window_bounds = array<i64: 1, 128>}, {pipeline_mode = #tpu.pipeline_mode<synchronous>, transform_indices = @transform_3, window_bounds = array<i64: 128, 128>}, {pipeline_mode = #tpu.pipeline_mode<synchronous>, transform_indices = @transform_4, window_bounds = array<i64: 1, 128>}, {pipeline_mode = #tpu.pipeline_mode<synchronous>, transform_indices = @transform_5, window_bounds = array<i64: 128, 128>}, {pipeline_mode = #tpu.pipeline_mode<synchronous>, transform_indices = @transform_6, window_bounds = array<i64: 1, 128>}, {pipeline_mode = #tpu.pipeline_mode<synchronous>, transform_indices = @transform_7, window_bounds = array<i64: 8, 128>}, {transform_indices = @transform_8, window_bounds = array<i64: 1>}, {transform_indices = @transform_9, window_bounds = array<i64: 1, 1, 128>}]} {
    %c0 = arith.constant 0 : index
    %c0_0 = arith.constant 0 : index
    %0 = vector.load %arg1[%c0, %c0_0] : memref<128x32xf32, #tpu.memory_space<vmem>>, vector<128x32xf32>
    %1 = arith.truncf %0 : vector<128x32xf32> to vector<128x32xbf16>
    %c0_1 = arith.constant 0 : index
    %c0_2 = arith.constant 0 : index
    %2 = vector.load %arg2[%c0_1, %c0_2] : memref<32x128xbf16, #tpu.memory_space<vmem>>, vector<32x128xbf16>
    %cst = arith.constant dense<0.000000e+00> : vector<128x128xf32>
    %3 = tpu.matmul %1, %2, %cst {dimension_numbers = #tpu.dot_dimension_numbers<[1], [0], [0], [1], [0, 0, 1, 1], [], []>} : vector<128x32xbf16>, vector<32x128xbf16>, vector<128x128xf32> -> vector<128x128xf32>
    %c0_3 = arith.constant 0 : index
    %c0_4 = arith.constant 0 : index
    %4 = vector.load %arg3[%c0_3, %c0_4] : memref<1x128xf32, #tpu.memory_space<vmem>>, vector<1x128xf32>
    %5 = vector.broadcast %4 : vector<1x128xf32> to vector<128x128xf32>
    %6 = arith.addf %3, %5 : vector<128x128xf32>
    %cst_5 = arith.constant 2.000000e-01 : f32
    %7 = vector.broadcast %cst_5 : f32 to vector<128x128xf32>
    %8 = arith.mulf %7, %6 : vector<128x128xf32>
    %9 = arith.maximumf %6, %8 : vector<128x128xf32>
    %10 = arith.truncf %9 : vector<128x128xf32> to vector<128x128xbf16>
    %c0_6 = arith.constant 0 : index
    %c0_7 = arith.constant 0 : index
    %11 = vector.load %arg4[%c0_6, %c0_7] : memref<128x128xbf16, #tpu.memory_space<vmem>>, vector<128x128xbf16>
    %cst_8 = arith.constant dense<0.000000e+00> : vector<128x128xf32>
    %12 = tpu.matmul %10, %11, %cst_8 {dimension_numbers = #tpu.dot_dimension_numbers<[1], [0], [0], [1], [0, 0, 1, 1], [], []>} : vector<128x128xbf16>, vector<128x128xbf16>, vector<128x128xf32> -> vector<128x128xf32>
    %c0_9 = arith.constant 0 : index
    %c0_10 = arith.constant 0 : index
    %13 = vector.load %arg5[%c0_9, %c0_10] : memref<1x128xf32, #tpu.memory_space<vmem>>, vector<1x128xf32>
    %14 = vector.broadcast %13 : vector<1x128xf32> to vector<128x128xf32>
    %15 = arith.addf %12, %14 : vector<128x128xf32>
    %cst_11 = arith.constant 2.000000e-01 : f32
    %16 = vector.broadcast %cst_11 : f32 to vector<128x128xf32>
    %17 = arith.mulf %16, %15 : vector<128x128xf32>
    %18 = arith.maximumf %15, %17 : vector<128x128xf32>
    %19 = arith.truncf %18 : vector<128x128xf32> to vector<128x128xbf16>
    %c0_12 = arith.constant 0 : index
    %c0_13 = arith.constant 0 : index
    %20 = vector.load %arg6[%c0_12, %c0_13] : memref<128x128xbf16, #tpu.memory_space<vmem>>, vector<128x128xbf16>
    %cst_14 = arith.constant dense<0.000000e+00> : vector<128x128xf32>
    %21 = tpu.matmul %19, %20, %cst_14 {dimension_numbers = #tpu.dot_dimension_numbers<[1], [0], [0], [1], [0, 0, 1, 1], [], []>} : vector<128x128xbf16>, vector<128x128xbf16>, vector<128x128xf32> -> vector<128x128xf32>
    %c0_15 = arith.constant 0 : index
    %c0_16 = arith.constant 0 : index
    %22 = vector.load %arg7[%c0_15, %c0_16] : memref<1x128xf32, #tpu.memory_space<vmem>>, vector<1x128xf32>
    %23 = vector.broadcast %22 : vector<1x128xf32> to vector<128x128xf32>
    %24 = arith.addf %21, %23 : vector<128x128xf32>
    %cst_17 = arith.constant 2.000000e-01 : f32
    %25 = vector.broadcast %cst_17 : f32 to vector<128x128xf32>
    %26 = arith.mulf %25, %24 : vector<128x128xf32>
    %27 = arith.maximumf %24, %26 : vector<128x128xf32>
    %c0_18 = arith.constant 0 : index
    %c0_19 = arith.constant 0 : index
    %28 = vector.load %arg8[%c0_18, %c0_19] : memref<8x128xbf16, #tpu.memory_space<vmem>>, vector<8x128xbf16>
    %29 = arith.truncf %27 : vector<128x128xf32> to vector<128x128xbf16>
    %cst_20 = arith.constant dense<0.000000e+00> : vector<8x128xf32>
    %30 = tpu.matmul %28, %29, %cst_20 {dimension_numbers = #tpu.dot_dimension_numbers<[1], [1], [0], [0], [0, 0, 1, 0], [], []>} : vector<8x128xbf16>, vector<128x128xbf16>, vector<8x128xf32> -> vector<8x128xf32>
    %31 = vector.extract_strided_slice %30 {offsets = [0, 0], sizes = [1, 128], strides = [1, 1]} : vector<8x128xf32> to vector<1x128xf32>
    %c0_21 = arith.constant 0 : index
    %32 = memref.load %arg9[%c0_21] : memref<1xf32, #tpu.memory_space<smem>>
    %33 = vector.broadcast %32 : f32 to vector<1x128xf32>
    %34 = arith.addf %31, %33 : vector<1x128xf32>
    %cst_22 = arith.constant 0.000000e+00 : f32
    %35 = vector.broadcast %cst_22 : f32 to vector<1x128xf32>
    %36 = arith.subf %35, %34 : vector<1x128xf32>
    %37 = math.exp %36 : vector<1x128xf32>
    %cst_23 = arith.constant 1.000000e+00 : f32
    %38 = vector.broadcast %cst_23 : f32 to vector<1x128xf32>
    %39 = arith.addf %38, %37 : vector<1x128xf32>
    %40 = tpu.reciprocal %39 {approx = true} : vector<1x128xf32> -> vector<1x128xf32>
    %cst_24 = arith.constant 0.000000e+00 : f32
    %cst_25 = arith.constant 1.000000e+00 : f32
    %41 = vector.broadcast %cst_24 : f32 to vector<1x128xf32>
    %42 = arith.maximumf %41, %40 : vector<1x128xf32>
    %43 = vector.broadcast %cst_25 : f32 to vector<1x128xf32>
    %44 = arith.minimumf %43, %42 : vector<1x128xf32>
    %45 = vector.shape_cast %44 : vector<1x128xf32> to vector<1x1x128xf32>
    %c0_26 = arith.constant 0 : index
    %c0_27 = arith.constant 0 : index
    %c0_28 = arith.constant 0 : index
    %46 = vector.load %arg10[%c0_26, %c0_27, %c0_28] : memref<1x1x128xf32, #tpu.memory_space<vmem>>, vector<1x1x128xf32>
    tpu.vector_store %arg10[%c0_26, %c0_27, %c0_28], %45 {strides = array<i32>} : memref<1x1x128xf32, #tpu.memory_space<vmem>>, vector<1x1x128xf32>,
    return
  }
  func.func @transform_0(%arg0: i32) -> (i32, i32) {
    %c0_i32 = arith.constant 0 : i32
    %c0_i32_0 = arith.constant 0 : i32
    return %arg0, %c0_i32 : i32, i32
  }
  func.func @transform_1(%arg0: i32) -> (i32, i32) {
    %c0_i32 = arith.constant 0 : i32
    %c0_i32_0 = arith.constant 0 : i32
    %c0_i32_1 = arith.constant 0 : i32
    return %c0_i32, %c0_i32_0 : i32, i32
  }
  func.func @transform_2(%arg0: i32) -> (i32, i32) {
    %c0_i32 = arith.constant 0 : i32
    %c0_i32_0 = arith.constant 0 : i32
    %c0_i32_1 = arith.constant 0 : i32
    return %c0_i32, %c0_i32_0 : i32, i32
  }
  func.func @transform_3(%arg0: i32) -> (i32, i32) {
    %c0_i32 = arith.constant 0 : i32
    %c0_i32_0 = arith.constant 0 : i32
    %c0_i32_1 = arith.constant 0 : i32
    return %c0_i32, %c0_i32_0 : i32, i32
  }
  func.func @transform_4(%arg0: i32) -> (i32, i32) {
    %c0_i32 = arith.constant 0 : i32
    %c0_i32_0 = arith.constant 0 : i32
    %c0_i32_1 = arith.constant 0 : i32
    return %c0_i32, %c0_i32_0 : i32, i32
  }
  func.func @transform_5(%arg0: i32) -> (i32, i32) {
    %c0_i32 = arith.constant 0 : i32
    %c0_i32_0 = arith.constant 0 : i32
    %c0_i32_1 = arith.constant 0 : i32
    return %c0_i32, %c0_i32_0 : i32, i32
  }
  func.func @transform_6(%arg0: i32) -> (i32, i32) {
    %c0_i32 = arith.constant 0 : i32
    %c0_i32_0 = arith.constant 0 : i32
    %c0_i32_1 = arith.constant 0 : i32
    return %c0_i32, %c0_i32_0 : i32, i32
  }
  func.func @transform_7(%arg0: i32) -> (i32, i32) {
    %c0_i32 = arith.constant 0 : i32
    %c0_i32_0 = arith.constant 0 : i32
    %c0_i32_1 = arith.constant 0 : i32
    return %c0_i32, %c0_i32_0 : i32, i32
  }
  func.func @transform_8(%arg0: i32) -> i32 {
    %c0_i32 = arith.constant 0 : i32
    %c0_i32_0 = arith.constant 0 : i32
    return %c0_i32 : i32
  }
  func.func @transform_9(%arg0: i32) -> (i32, i32, i32) {
    %c0_i32 = arith.constant 0 : i32
    %c0_i32_0 = arith.constant 0 : i32
    %c0_i32_1 = arith.constant 0 : i32
    return %arg0, %c0_i32, %c0_i32_0 : i32, i32, i32
  }
}

</mosaic_0001>

<llo_original>
// kernel: tpu_custom_call.1
$region0: #{tpu_custom_call.1}
  #allocation0 [shape = 'u32[]', space=smem, size = 0x4, offset = 0x4, fixed_abs, tag = 'smem constant byte address 0x4 - core index']
  #allocation1 [shape = 'u32[144,128]{1,0:T(1,128)}', space=vmem, size = 0x12000, scoped, tag = 'internal scratch']
  #allocation2 [shape = 'f32[1]{0:T(128)S(6)}', space=smem, size = 0x200, scoped, tag = 'scoped memory for tpu_custom_call.1']
  %s0 = inlined_call_operand.vmem [shape: f32[1024,32], index: 0, kind: input, shape index: {}]
  %s1 = inlined_call_operand.vmem [shape: bf16[32,128], index: 1, kind: input, shape index: {}]
  %s2 = inlined_call_operand.vmem [shape: f32[1,128], index: 2, kind: input, shape index: {}]
  %s3 = inlined_call_operand.vmem [shape: bf16[128,128], index: 3, kind: input, shape index: {}]
  %s4 = inlined_call_operand.vmem [shape: f32[1,128], index: 4, kind: input, shape index: {}]
  %s5 = inlined_call_operand.vmem [shape: bf16[128,128], index: 5, kind: input, shape index: {}]
  %s6 = inlined_call_operand.vmem [shape: f32[1,128], index: 6, kind: input, shape index: {}]
  %s7 = inlined_call_operand.vmem [shape: bf16[8,128], index: 7, kind: input, shape index: {}]
  %s8 = inlined_call_operand.<no memory space> [shape: f32[1], index: 8, kind: input, shape index: {}]
  %s9 = inlined_call_operand.hbm [shape: f32[8,1,128], index: 9, kind: output, shape index: {}]
  %s10 = sld [smem:[#allocation0]]
  $region69: #{tpu_custom_call.1} parent=0
    _
  %s12 = ssub.s32 1, %s10
  %s13 = scalar_select 0, %s12, %s10
  %14 = sst [smem:[#allocation2]] %s8
  $region1: #{tpu_custom_call.1} parent=0
    #allocation3 [shape = 'u8[1024]{0}', space=vmem, size = 0x400, scoped, tag = 'output window, operand 0']
    #allocation4 [shape = 's32[2]{0}', space=sflag, size = 0x8, scoped, tag = 'scoped memory for tpu_custom_call.1']
    %15 = vsyncpa [#allocation4], 0
    %s16 = scalar_lea.sflag [#allocation4], 1
    %17 = vsyncpa %s16, 0
    loop: start=0, step=1, limit=10
    $region2: #{tpu_custom_call.1} parent=1 // loop_pre_header
      _
    $region3: #{tpu_custom_call.1} parent=1 // loop_header
      %s19 = sphi 0, %s23
      %p20 = scmp.ge.s32.totalorder %s19, 10
      %s29 = sphi 0, %s31
      %s32 = sphi 0, %s29
      %s33 = sphi 0, %s32
      %s49 = sphi 0, %s33
      %s53 = sphi 0, %s53
      %s55 = sphi 0, %s53
      %s56 = sphi 0, %s55
      %s70 = sphi 0, %s56
      %s74 = sphi 0, %s74
      %s76 = sphi 0, %s74
      %s77 = sphi 0, %s76
      %s91 = sphi 0, %s77
      %s95 = sphi 0, %s95
      %s97 = sphi 0, %s95
      %s98 = sphi 0, %s97
      %s112 = sphi 0, %s98
      %s116 = sphi 0, %s116
      %s118 = sphi 0, %s116
      %s119 = sphi 0, %s118
      %s133 = sphi 0, %s119
      %s137 = sphi 0, %s137
      %s139 = sphi 0, %s137
      %s140 = sphi 0, %s139
      %s154 = sphi 0, %s140
      %s158 = sphi 0, %s158
      %s160 = sphi 0, %s158
      %s161 = sphi 0, %s160
      %s175 = sphi 0, %s161
      %s179 = sphi 0, %s179
      %s181 = sphi 0, %s179
      %s182 = sphi 0, %s181
      %s196 = sphi 0, %s182
      %s200 = sphi 0, %s200
      %s202 = sphi 0, %s200
      %s203 = sphi 0, %s202
      %s217 = sphi 0, %s203
      %s223 = sphi 0, %s225
      %s226 = sphi 0, %s223
      %s227 = sphi 0, %s226
      %s243 = sphi 0, %s227
    $region4: #{tpu_custom_call.1} parent=1 // loop_header_branch
      %22 = sbr.rel (%p20) target = $region8
    $region5: #{tpu_custom_call.1} parent=1 // loop_body
      %s24 = ssub.s32 %s19, 1
      %s25 = ssub.s32 %s19, 2
      %s26 = sadd.s32 %s19, 1
      %s27 = ssub.s32 %s19, %s26
      %p28 = scmp.eq.s32.totalorder %s27, 0
      %s30 = sadd.s32 %s29, 1
      %s31 = scalar_select %p28, %s29, %s30
      %p34 = pneg %p28
      %p35 = scmp.eq.s32.totalorder %s19, 7
      %p36 = por %p34, %p35
      %p37 = scmp.ne.s32.totalorder %s29, %s32
      %p38 = scmp.eq.s32.totalorder %s19, 0
      %p39 = por %p37, %p38
      %p40 = scmp.ne.s32.totalorder %s29, %s32
      %p41 = scmp.eq.s32.totalorder %s24, 7
      %p42 = por %p40, %p41
      %p43 = scmp.ne.s32.totalorder %s32, %s33
      %p44 = scmp.eq.s32.totalorder %s24, 0
      %p45 = por %p43, %p44
      %p46 = scmp.ne.s32.totalorder %s32, %s33
      %p47 = scmp.eq.s32.totalorder %s25, 7
      %p48 = por %p46, %p47
      %p50 = scmp.ne.s32.totalorder %s33, %s49
      %p51 = scmp.eq.s32.totalorder %s25, 0
      %p52 = por %p50, %p51
      %s54 = sadd.s32 %s53, 1
      %p57 = scmp.eq.s32.totalorder %s19, 7
      %p58 = scmp.ne.s32.totalorder %s53, %s55
      %p59 = scmp.eq.s32.totalorder %s19, 0
      %p60 = por %p58, %p59
      %p61 = scmp.ne.s32.totalorder %s53, %s55
      %p62 = scmp.eq.s32.totalorder %s24, 7
      %p63 = por %p61, %p62
      %p64 = scmp.ne.s32.totalorder %s55, %s56
      %p65 = scmp.eq.s32.totalorder %s24, 0
      %p66 = por %p64, %p65
      %p67 = scmp.ne.s32.totalorder %s55, %s56
      %p68 = scmp.eq.s32.totalorder %s25, 7
      %p69 = por %p67, %p68
      %p71 = scmp.ne.s32.totalorder %s56, %s70
      %p72 = scmp.eq.s32.totalorder %s25, 0
      %p73 = por %p71, %p72
      %s75 = sadd.s32 %s74, 1
      %p78 = scmp.eq.s32.totalorder %s19, 7
      %p79 = scmp.ne.s32.totalorder %s74, %s76
      %p80 = scmp.eq.s32.totalorder %s19, 0
      %p81 = por %p79, %p80
      %p82 = scmp.ne.s32.totalorder %s74, %s76
      %p83 = scmp.eq.s32.totalorder %s24, 7
      %p84 = por %p82, %p83
      %p85 = scmp.ne.s32.totalorder %s76, %s77
      %p86 = scmp.eq.s32.totalorder %s24, 0
      %p87 = por %p85, %p86
      %p88 = scmp.ne.s32.totalorder %s76, %s77
      %p89 = scmp.eq.s32.totalorder %s25, 7
      %p90 = por %p88, %p89
      %p92 = scmp.ne.s32.totalorder %s77, %s91
      %p93 = scmp.eq.s32.totalorder %s25, 0
      %p94 = por %p92, %p93
      %s96 = sadd.s32 %s95, 1
      %p99 = scmp.eq.s32.totalorder %s19, 7
      %p100 = scmp.ne.s32.totalorder %s95, %s97
      %p101 = scmp.eq.s32.totalorder %s19, 0
      %p102 = por %p100, %p101
      %p103 = scmp.ne.s32.totalorder %s95, %s97
      %p104 = scmp.eq.s32.totalorder %s24, 7
      %p105 = por %p103, %p104
      %p106 = scmp.ne.s32.totalorder %s97, %s98
      %p107 = scmp.eq.s32.totalorder %s24, 0
      %p108 = por %p106, %p107
      %p109 = scmp.ne.s32.totalorder %s97, %s98
      %p110 = scmp.eq.s32.totalorder %s25, 7
      %p111 = por %p109, %p110
      %p113 = scmp.ne.s32.totalorder %s98, %s112
      %p114 = scmp.eq.s32.totalorder %s25, 0
      %p115 = por %p113, %p114
      %s117 = sadd.s32 %s116, 1
      %p120 = scmp.eq.s32.totalorder %s19, 7
      %p121 = scmp.ne.s32.totalorder %s116, %s118
      %p122 = scmp.eq.s32.totalorder %s19, 0
      %p123 = por %p121, %p122
      %p124 = scmp.ne.s32.totalorder %s116, %s118
      %p125 = scmp.eq.s32.totalorder %s24, 7
      %p126 = por %p124, %p125
      %p127 = scmp.ne.s32.totalorder %s118, %s119
      %p128 = scmp.eq.s32.totalorder %s24, 0
      %p129 = por %p127, %p128
      %p130 = scmp.ne.s32.totalorder %s118, %s119
      %p131 = scmp.eq.s32.totalorder %s25, 7
      %p132 = por %p130, %p131
      %p134 = scmp.ne.s32.totalorder %s119, %s133
      %p135 = scmp.eq.s32.totalorder %s25, 0
      %p136 = por %p134, %p135
      %s138 = sadd.s32 %s137, 1
      %p141 = scmp.eq.s32.totalorder %s19, 7
      %p142 = scmp.ne.s32.totalorder %s137, %s139
      %p143 = scmp.eq.s32.totalorder %s19, 0
      %p144 = por %p142, %p143
      %p145 = scmp.ne.s32.totalorder %s137, %s139
      %p146 = scmp.eq.s32.totalorder %s24, 7
      %p147 = por %p145, %p146
      %p148 = scmp.ne.s32.totalorder %s139, %s140
      %p149 = scmp.eq.s32.totalorder %s24, 0
      %p150 = por %p148, %p149
      %p151 = scmp.ne.s32.totalorder %s139, %s140
      %p152 = scmp.eq.s32.totalorder %s25, 7
      %p153 = por %p151, %p152
      %p155 = scmp.ne.s32.totalorder %s140, %s154
      %p156 = scmp.eq.s32.totalorder %s25, 0
      %p157 = por %p155, %p156
      %s159 = sadd.s32 %s158, 1
      %p162 = scmp.eq.s32.totalorder %s19, 7
      %p163 = scmp.ne.s32.totalorder %s158, %s160
      %p164 = scmp.eq.s32.totalorder %s19, 0
      %p165 = por %p163, %p164
      %p166 = scmp.ne.s32.totalorder %s158, %s160
      %p167 = scmp.eq.s32.totalorder %s24, 7
      %p168 = por %p166, %p167
      %p169 = scmp.ne.s32.totalorder %s160, %s161
      %p170 = scmp.eq.s32.totalorder %s24, 0
      %p171 = por %p169, %p170
      %p172 = scmp.ne.s32.totalorder %s160, %s161
      %p173 = scmp.eq.s32.totalorder %s25, 7
      %p174 = por %p172, %p173
      %p176 = scmp.ne.s32.totalorder %s161, %s175
      %p177 = scmp.eq.s32.totalorder %s25, 0
      %p178 = por %p176, %p177
      %s180 = sadd.s32 %s179, 1
      %p183 = scmp.eq.s32.totalorder %s19, 7
      %p184 = scmp.ne.s32.totalorder %s179, %s181
      %p185 = scmp.eq.s32.totalorder %s19, 0
      %p186 = por %p184, %p185
      %p187 = scmp.ne.s32.totalorder %s179, %s181
      %p188 = scmp.eq.s32.totalorder %s24, 7
      %p189 = por %p187, %p188
      %p190 = scmp.ne.s32.totalorder %s181, %s182
      %p191 = scmp.eq.s32.totalorder %s24, 0
      %p192 = por %p190, %p191
      %p193 = scmp.ne.s32.totalorder %s181, %s182
      %p194 = scmp.eq.s32.totalorder %s25, 7
      %p195 = por %p193, %p194
      %p197 = scmp.ne.s32.totalorder %s182, %s196
      %p198 = scmp.eq.s32.totalorder %s25, 0
      %p199 = por %p197, %p198
      %s201 = sadd.s32 %s200, 1
      %p204 = scmp.eq.s32.totalorder %s19, 7
      %p205 = scmp.ne.s32.totalorder %s200, %s202
      %p206 = scmp.eq.s32.totalorder %s19, 0
      %p207 = por %p205, %p206
      %p208 = scmp.ne.s32.totalorder %s200, %s202
      %p209 = scmp.eq.s32.totalorder %s24, 7
      %p210 = por %p208, %p209
      %p211 = scmp.ne.s32.totalorder %s202, %s203
      %p212 = scmp.eq.s32.totalorder %s24, 0
      %p213 = por %p211, %p212
      %p214 = scmp.ne.s32.totalorder %s202, %s203
      %p215 = scmp.eq.s32.totalorder %s25, 7
      %p216 = por %p214, %p215
      %p218 = scmp.ne.s32.totalorder %s203, %s217
      %p219 = scmp.eq.s32.totalorder %s25, 0
      %p220 = por %p218, %p219
      %s221 = ssub.s32 %s19, %s26
      %p222 = scmp.eq.s32.totalorder %s221, 0
      %s224 = sadd.s32 %s223, 1
      %s225 = scalar_select %p222, %s223, %s224
      %p228 = pneg %p222
      %p229 = scmp.eq.s32.totalorder %s19, 7
      %p230 = por %p228, %p229
      %p231 = scmp.ne.s32.totalorder %s223, %s226
      %p232 = scmp.eq.s32.totalorder %s19, 0
      %p233 = por %p231, %p232
      %p234 = scmp.ne.s32.totalorder %s223, %s226
      %p235 = scmp.eq.s32.totalorder %s24, 7
      %p236 = por %p234, %p235
      %p237 = scmp.ne.s32.totalorder %s226, %s227
      %p238 = scmp.eq.s32.totalorder %s24, 0
      %p239 = por %p237, %p238
      %p240 = scmp.ne.s32.totalorder %s226, %s227
      %p241 = scmp.eq.s32.totalorder %s25, 7
      %p242 = por %p240, %p241
      %p244 = scmp.ne.s32.totalorder %s227, %s243
      %p245 = scmp.eq.s32.totalorder %s25, 0
      %p246 = por %p244, %p245
      %p247 = scmp.le.s32.totalorder 1, %s19
      %p248 = scmp.lt.s32.totalorder %s19, 9
      %p249 = pnand %p247, %p248
      %p250 = pneg %p249
      // Predicated region
      $region9: #{tpu_custom_call.1} parent=5 // pred_check
        _
      $region10: #{tpu_custom_call.1} parent=5 // pred_check_branch
        %252 = sbr.rel (%p249) target = $region12
      $region11: #{tpu_custom_call.1} parent=5 // pred_region
        %s253 = ssub.s32 %s19, 1
        // Predicated region
        $region13: #{tpu_custom_call.1} parent=11 // pred_check
          %p254 = pneg %p66
        $region14: #{tpu_custom_call.1} parent=11 // pred_check_branch
          %256 = sbr.rel (%p254) target = $region16
        $region15: #{tpu_custom_call.1} parent=11 // pred_region
          _
        $region16: #{tpu_custom_call.1} parent=11 // pred_fallthru
          _
        // Predicated region
        $region17: #{tpu_custom_call.1} parent=11 // pred_check
          %p257 = pneg %p87
        $region18: #{tpu_custom_call.1} parent=11 // pred_check_branch
          %259 = sbr.rel (%p257) target = $region20
        $region19: #{tpu_custom_call.1} parent=11 // pred_region
          _
        $region20: #{tpu_custom_call.1} parent=11 // pred_fallthru
          _
        // Predicated region
        $region21: #{tpu_custom_call.1} parent=11 // pred_check
          %p260 = pneg %p108
        $region22: #{tpu_custom_call.1} parent=11 // pred_check_branch
          %262 = sbr.rel (%p260) target = $region24
        $region23: #{tpu_custom_call.1} parent=11 // pred_region
          _
        $region24: #{tpu_custom_call.1} parent=11 // pred_fallthru
          _
        // Predicated region
        $region25: #{tpu_custom_call.1} parent=11 // pred_check
          %p263 = pneg %p129
        $region26: #{tpu_custom_call.1} parent=11 // pred_check_branch
          %265 = sbr.rel (%p263) target = $region28
        $region27: #{tpu_custom_call.1} parent=11 // pred_region
          _
        $region28: #{tpu_custom_call.1} parent=11 // pred_fallthru
          _
        // Predicated region
        $region29: #{tpu_custom_call.1} parent=11 // pred_check
          %p266 = pneg %p150
        $region30: #{tpu_custom_call.1} parent=11 // pred_check_branch
          %268 = sbr.rel (%p266) target = $region32
        $region31: #{tpu_custom_call.1} parent=11 // pred_region
          _
        $region32: #{tpu_custom_call.1} parent=11 // pred_fallthru
          _
        // Predicated region
        $region33: #{tpu_custom_call.1} parent=11 // pred_check
          %p269 = pneg %p171
        $region34: #{tpu_custom_call.1} parent=11 // pred_check_branch
          %271 = sbr.rel (%p269) target = $region36
        $region35: #{tpu_custom_call.1} parent=11 // pred_region
          _
        $region36: #{tpu_custom_call.1} parent=11 // pred_fallthru
          _
        // Predicated region
        $region37: #{tpu_custom_call.1} parent=11 // pred_check
          %p272 = pneg %p192
        $region38: #{tpu_custom_call.1} parent=11 // pred_check_branch
          %274 = sbr.rel (%p272) target = $region40
        $region39: #{tpu_custom_call.1} parent=11 // pred_region
          _
        $region40: #{tpu_custom_call.1} parent=11 // pred_fallthru
          _
        // Predicated region
        $region41: #{tpu_custom_call.1} parent=11 // pred_check
          %p275 = pneg %p213
        $region42: #{tpu_custom_call.1} parent=11 // pred_check_branch
          %277 = sbr.rel (%p275) target = $region44
        $region43: #{tpu_custom_call.1} parent=11 // pred_region
          _
        $region44: #{tpu_custom_call.1} parent=11 // pred_fallthru
          _
      $region12: #{tpu_custom_call.1} parent=5 // pred_fallthru
        _
      %p278 = scmp.lt.s32.totalorder %s19, 8
      // Predicated region
      $region45: #{tpu_custom_call.1} parent=5 // pred_check
        %p279 = pneg %p278
      $region46: #{tpu_custom_call.1} parent=5 // pred_check_branch
        %281 = sbr.rel (%p279) target = $region48
      $region47: #{tpu_custom_call.1} parent=5 // pred_region
        // Predicated region
        $region49: #{tpu_custom_call.1} parent=47 // pred_check
          %p282 = pneg %p39
        $region50: #{tpu_custom_call.1} parent=47 // pred_check_branch
          %284 = sbr.rel (%p282) target = $region52
        $region51: #{tpu_custom_call.1} parent=47 // pred_region
          %s285 = smul.u32 16, %s19
          %p286 = scmp.lt.s32.totalorder %s285, 127
          %s287 = scalar_select %p286, %s285, 127
          %s288 = smul.addr %s287, 8
          %s289 = scalar_lea.vmem %s0, %s288
          %s290 = smul.u32 16, %s19
        $region52: #{tpu_custom_call.1} parent=47 // pred_fallthru
          _
      $region48: #{tpu_custom_call.1} parent=5 // pred_fallthru
        _
      %p291 = scmp.le.s32.totalorder 1, %s19
      %p292 = scmp.lt.s32.totalorder %s19, 9
      %p293 = pnand %p291, %p292
      %p294 = pneg %p293
      // Predicated region
      $region53: #{tpu_custom_call.1} parent=5 // pred_check
        _
      $region54: #{tpu_custom_call.1} parent=5 // pred_check_branch
        %296 = sbr.rel (%p293) target = $region56
      $region55: #{tpu_custom_call.1} parent=5 // pred_region
        %s297 = ssub.s32 %s19, 1
        %s298 = smul.u32 16, %s24
        %p299 = scmp.lt.s32.totalorder %s298, 127
        %s300 = scalar_select %p299, %s298, 127
        %s301 = smul.addr %s300, 8
        %s302 = scalar_lea.vmem %s0, %s301
        %p303 = pneg %p45
        %p304 = pneg %p42
        %p305 = pneg %p66
        %p306 = pneg %p63
        %p307 = pneg %p87
        %p308 = pneg %p84
        %p309 = pneg %p108
        %p310 = pneg %p105
        %p311 = pneg %p129
        %p312 = pneg %p126
        %p313 = pneg %p150
        %p314 = pneg %p147
        %p315 = pneg %p171
        %p316 = pneg %p168
        %p317 = pneg %p192
        %p318 = pneg %p189
        %p319 = pneg %p213
        %p320 = pneg %p210
        %p321 = pneg %p239
        %p322 = pneg %p236
        %s323 = sand.u32 %s226, 1
        %s324 = scalar_lea.sflag [#allocation4], %s323
        %s325 = sand.u32 %s226, 1
        %s326 = scalar_lea.vmem [#allocation3], %s325
        %s327 = smul.u32 16, %s24
        %p328 = scmp.lt.s32.totalorder %s327, 127
        %s329 = scalar_select %p328, %s327, 127
        %s330 = smul.addr %s329, 8
        %s331 = scalar_lea.vmem %s0, %s330
        %s332 = smul.u32 16, %s24
        %v334 = vld [vmem:[%s331] sm:$0xff]
        %v335 = vld [vmem:[%s331 + $0x8] sm:$0xff]
        %v336 = vld [vmem:[%s331 + $0x10] sm:$0xff]
        %v337 = vld [vmem:[%s331 + $0x18] sm:$0xff]
        %v338 = vld [vmem:[%s331 + $0x20] sm:$0xff]
        %v339 = vld [vmem:[%s331 + $0x28] sm:$0xff]
        %v340 = vld [vmem:[%s331 + $0x30] sm:$0xff]
        %v341 = vld [vmem:[%s331 + $0x38] sm:$0xff]
        %v342 = vld [vmem:[%s331 + $0x40] sm:$0xff]
        %v343 = vld [vmem:[%s331 + $0x48] sm:$0xff]
        %v344 = vld [vmem:[%s331 + $0x50] sm:$0xff]
        %v345 = vld [vmem:[%s331 + $0x58] sm:$0xff]
        %v346 = vld [vmem:[%s331 + $0x60] sm:$0xff]
        %v347 = vld [vmem:[%s331 + $0x68] sm:$0xff]
        %v348 = vld [vmem:[%s331 + $0x70] sm:$0xff]
        %v349 = vld [vmem:[%s331 + $0x78] sm:$0xff]
        %v350 = vpack.c.bf16 %v335, %v334
        %v351 = vpack.c.bf16 %v337, %v336
        %v352 = vpack.c.bf16 %v339, %v338
        %v353 = vpack.c.bf16 %v341, %v340
        %v354 = vpack.c.bf16 %v343, %v342
        %v355 = vpack.c.bf16 %v345, %v344
        %v356 = vpack.c.bf16 %v347, %v346
        %v357 = vpack.c.bf16 %v349, %v348
        %v358 = vld [vmem:[%s1] sm:$0xf]
        %v359 = vld [vmem:[%s1 + $0x4] sm:$0xf]
        %v360 = vld [vmem:[%s1 + $0x8] sm:$0xf]
        %v361 = vld [vmem:[%s1 + $0xc] sm:$0xf]
        %v362 = vld [vmem:[%s2] sm:$0x1]
        %v364 = vlaneseq
        %v365 = vshrl.u32 %v364, 7
        %v366 = vsub.s32 0, %v365
        %v367 = vrot.slane %v362, %v366
        %v373 = vunpack.c.l.b16 %v358
        %v374 = vunpack.c.l.b16 %v359
        %v375 = vunpack.c.l.b16 %v360
        %v376 = vunpack.c.l.b16 %v361
        %v377 = vpack.c.b16 %v374, %v373
        %v378 = vpack.c.b16 %v376, %v375
        %vm381 = vcmask 261120
        %v383 = vsel %vm381, %v350, 0
        %v386 = vsel %vm381, %v351, 0
        %v389 = vsel %vm381, %v352, 0
        %v392 = vsel %vm381, %v353, 0
        %v395 = vsel %vm381, %v354, 0
        %v398 = vsel %vm381, %v355, 0
        %v401 = vsel %vm381, %v356, 0
        %v404 = vsel %vm381, %v357, 0
        %406 = vmatprep.subr.bf16.mxu0 0
        %407 = vmatpush1.bf16.msra.mxu0 %v377
        %408 = vmatprep.subr.bf16.mxu0 0
        %409 = vmatpush1.bf16.msra.mxu0 %v378
        %410 = vmatprep.subr.bf16.mxu0 0
        %411 = vmatpush1.bf16.msra.mxu0 0
        %412 = vmatprep.subr.bf16.mxu0 0
        %413 = vmatpush1.bf16.msra.mxu0 0
        %414 = vmatprep.subr.bf16.mxu0 0
        %415 = vmatpush1.bf16.msra.mxu0 0
        %416 = vmatprep.subr.bf16.mxu0 0
        %417 = vmatpush1.bf16.msra.mxu0 0
        %418 = vmatprep.subr.bf16.mxu0 0
        %419 = vmatpush1.bf16.msra.mxu0 0
        %420 = vmatprep.subr.bf16.mxu0 0
        %421 = vmatpush1.bf16.msra.mxu0 0
        %422 = vmatprep.subr.bf16.mxu0 0
        %423 = vmatpush1.bf16.msra.mxu0 0
        %424 = vmatprep.subr.bf16.mxu0 0
        %425 = vmatpush1.bf16.msra.mxu0 0
        %426 = vmatprep.subr.bf16.mxu0 0
        %427 = vmatpush1.bf16.msra.mxu0 0
        %428 = vmatprep.subr.bf16.mxu0 0
        %429 = vmatpush1.bf16.msra.mxu0 0
        %430 = vmatprep.subr.bf16.mxu0 0
        %431 = vmatpush1.bf16.msra.mxu0 0
        %432 = vmatprep.subr.bf16.mxu0 0
        %433 = vmatpush1.bf16.msra.mxu0 0
        %434 = vmatprep.subr.bf16.mxu0 0
        %435 = vmatpush1.bf16.msra.mxu0 0
        %436 = vmatprep.subr.bf16.mxu0 0
        %437 = vmatpush1.bf16.msra.mxu0 0
        %438 = vmatprep.mubr.bf16.mxu0 0
        %439 = vmatmul.mubr.bf16.gmra.mrb[0].mxu0 %v383
        %v440 = vpop.f32.mrb[0].mxu0
        %v441 = vadd.f32 %v367, %v440
        %v442 = vpop.f32.mrb[0].mxu0
        %v443 = vpop.f32.mrb[0].mxu0
        %v444 = vadd.f32 %v367, %v443
        %v445 = vpop.f32.mrb[0].mxu0
        %446 = vmatprep.mubr.bf16.mxu0 0
        %447 = vmatmul.mubr.bf16.gmra.mrb[0].mxu0 %v386
        %v448 = vpop.f32.mrb[0].mxu0
        %v449 = vadd.f32 %v367, %v448
        %v450 = vpop.f32.mrb[0].mxu0
        %v451 = vpop.f32.mrb[0].mxu0
        %v452 = vadd.f32 %v367, %v451
        %v453 = vpop.f32.mrb[0].mxu0
        %454 = vmatprep.mubr.bf16.mxu0 0
        %455 = vmatmul.mubr.bf16.gmra.mrb[0].mxu0 %v389
        %v456 = vpop.f32.mrb[0].mxu0
        %v457 = vadd.f32 %v367, %v456
        %v458 = vpop.f32.mrb[0].mxu0
        %v459 = vpop.f32.mrb[0].mxu0
        %v460 = vadd.f32 %v367, %v459
        %v461 = vpop.f32.mrb[0].mxu0
        %462 = vmatprep.mubr.bf16.mxu0 0
        %463 = vmatmul.mubr.bf16.gmra.mrb[0].mxu0 %v392
        %v464 = vpop.f32.mrb[0].mxu0
        %v465 = vadd.f32 %v367, %v464
        %v466 = vpop.f32.mrb[0].mxu0
        %v467 = vpop.f32.mrb[0].mxu0
        %v468 = vadd.f32 %v367, %v467
        %v469 = vpop.f32.mrb[0].mxu0
        %470 = vmatprep.mubr.bf16.mxu0 0
        %471 = vmatmul.mubr.bf16.gmra.mrb[0].mxu0 %v395
        %v472 = vpop.f32.mrb[0].mxu0
        %v473 = vadd.f32 %v367, %v472
        %v474 = vpop.f32.mrb[0].mxu0
        %v475 = vpop.f32.mrb[0].mxu0
        %v476 = vadd.f32 %v367, %v475
        %v477 = vpop.f32.mrb[0].mxu0
        %478 = vmatprep.mubr.bf16.mxu0 0
        %479 = vmatmul.mubr.bf16.gmra.mrb[0].mxu0 %v398
        %v480 = vpop.f32.mrb[0].mxu0
        %v481 = vadd.f32 %v367, %v480
        %v482 = vpop.f32.mrb[0].mxu0
        %v483 = vpop.f32.mrb[0].mxu0
        %v484 = vadd.f32 %v367, %v483
        %v485 = vpop.f32.mrb[0].mxu0
        %486 = vmatprep.mubr.bf16.mxu0 0
        %487 = vmatmul.mubr.bf16.gmra.mrb[0].mxu0 %v401
        %v488 = vpop.f32.mrb[0].mxu0
        %v489 = vadd.f32 %v367, %v488
        %v490 = vpop.f32.mrb[0].mxu0
        %v491 = vpop.f32.mrb[0].mxu0
        %v492 = vadd.f32 %v367, %v491
        %v493 = vpop.f32.mrb[0].mxu0
        %494 = vmatprep.mubr.bf16.mxu0 0
        %495 = vmatmul.mubr.bf16.gmra.mrb[0].mxu0 %v404
        %v496 = vpop.f32.mrb[0].mxu0
        %v497 = vadd.f32 %v367, %v496
        %v498 = vpop.f32.mrb[0].mxu0
        %v499 = vpop.f32.mrb[0].mxu0
        %v500 = vadd.f32 %v367, %v499
        %v501 = vpop.f32.mrb[0].mxu0
        %502 = vdwg.mxu0
        %v503 = vmul.f32 %v441, 0.2
        %v504 = vmul.f32 %v444, 0.2
        %v505 = vmul.f32 %v449, 0.2
        %v506 = vmul.f32 %v452, 0.2
        %v507 = vmul.f32 %v457, 0.2
        %v508 = vmul.f32 %v460, 0.2
        %v509 = vmul.f32 %v465, 0.2
        %v510 = vmul.f32 %v468, 0.2
        %v511 = vmul.f32 %v473, 0.2
        %v512 = vmul.f32 %v476, 0.2
        %v513 = vmul.f32 %v481, 0.2
        %v514 = vmul.f32 %v484, 0.2
        %v515 = vmul.f32 %v489, 0.2
        %v516 = vmul.f32 %v492, 0.2
        %v517 = vmul.f32 %v497, 0.2
        %v518 = vmul.f32 %v500, 0.2
        %v519 = vmax.f32 %v441, %v503
        %v520 = vmax.f32 %v444, %v504
        %v521 = vmax.f32 %v449, %v505
        %v522 = vmax.f32 %v452, %v506
        %v523 = vmax.f32 %v457, %v507
        %v524 = vmax.f32 %v460, %v508
        %v525 = vmax.f32 %v465, %v509
        %v526 = vmax.f32 %v468, %v510
        %v527 = vmax.f32 %v473, %v511
        %v528 = vmax.f32 %v476, %v512
        %v529 = vmax.f32 %v481, %v513
        %v530 = vmax.f32 %v484, %v514
        %v531 = vmax.f32 %v489, %v515
        %v532 = vmax.f32 %v492, %v516
        %v533 = vmax.f32 %v497, %v517
        %v534 = vmax.f32 %v500, %v518
        %v535 = vpack.c.bf16 %v520, %v519
        %v536 = vpack.c.bf16 %v522, %v521
        %v537 = vpack.c.bf16 %v524, %v523
        %v538 = vpack.c.bf16 %v526, %v525
        %v539 = vpack.c.bf16 %v528, %v527
        %v540 = vpack.c.bf16 %v530, %v529
        %v541 = vpack.c.bf16 %v532, %v531
        %v542 = vpack.c.bf16 %v534, %v533
        %v543 = vld [vmem:[%s3] sm:$0xf]
        %v544 = vld [vmem:[%s3 + $0x4] sm:$0xf]
        %v545 = vld [vmem:[%s3 + $0x8] sm:$0xf]
        %v546 = vld [vmem:[%s3 + $0xc] sm:$0xf]
        %v547 = vld [vmem:[%s3 + $0x10] sm:$0xf]
        %v548 = vld [vmem:[%s3 + $0x14] sm:$0xf]
        %v549 = vld [vmem:[%s3 + $0x18] sm:$0xf]
        %v550 = vld [vmem:[%s3 + $0x1c] sm:$0xf]
        %v551 = vld [vmem:[%s3 + $0x20] sm:$0xf]
        %v552 = vld [vmem:[%s3 + $0x24] sm:$0xf]
        %v553 = vld [vmem:[%s3 + $0x28] sm:$0xf]
        %v554 = vld [vmem:[%s3 + $0x2c] sm:$0xf]
        %v555 = vld [vmem:[%s3 + $0x30] sm:$0xf]
        %v556 = vld [vmem:[%s3 + $0x34] sm:$0xf]
        %v557 = vld [vmem:[%s3 + $0x38] sm:$0xf]
        %v558 = vld [vmem:[%s3 + $0x3c] sm:$0xf]
        %v559 = vld [vmem:[%s4] sm:$0x1]
        %v561 = vlaneseq
        %v562 = vshrl.u32 %v561, 7
        %v563 = vsub.s32 0, %v562
        %v564 = vrot.slane %v559, %v563
        %v582 = vunpack.c.l.b16 %v543
        %v583 = vunpack.c.l.b16 %v544
        %v584 = vunpack.c.l.b16 %v545
        %v585 = vunpack.c.l.b16 %v546
        %v586 = vunpack.c.l.b16 %v547
        %v587 = vunpack.c.l.b16 %v548
        %v588 = vunpack.c.l.b16 %v549
        %v589 = vunpack.c.l.b16 %v550
        %v590 = vunpack.c.l.b16 %v551
        %v591 = vunpack.c.l.b16 %v552
        %v592 = vunpack.c.l.b16 %v553
        %v593 = vunpack.c.l.b16 %v554
        %v594 = vunpack.c.l.b16 %v555
        %v595 = vunpack.c.l.b16 %v556
        %v596 = vunpack.c.l.b16 %v557
        %v597 = vunpack.c.l.b16 %v558
        %v598 = vpack.c.b16 %v583, %v582
        %v599 = vpack.c.b16 %v585, %v584
        %v600 = vpack.c.b16 %v587, %v586
        %v601 = vpack.c.b16 %v589, %v588
        %v602 = vpack.c.b16 %v591, %v590
        %v603 = vpack.c.b16 %v593, %v592
        %v604 = vpack.c.b16 %v595, %v594
        %v605 = vpack.c.b16 %v597, %v596
        %614 = vmatprep.subr.bf16.mxu0 0
        %615 = vmatpush1.bf16.msra.mxu0 %v598
        %616 = vmatprep.subr.bf16.mxu0 0
        %617 = vmatpush1.bf16.msra.mxu0 %v599
        %618 = vmatprep.subr.bf16.mxu0 0
        %619 = vmatpush1.bf16.msra.mxu0 %v600
        %620 = vmatprep.subr.bf16.mxu0 0
        %621 = vmatpush1.bf16.msra.mxu0 %v601
        %622 = vmatprep.subr.bf16.mxu0 0
        %623 = vmatpush1.bf16.msra.mxu0 %v602
        %624 = vmatprep.subr.bf16.mxu0 0
        %625 = vmatpush1.bf16.msra.mxu0 %v603
        %626 = vmatprep.subr.bf16.mxu0 0
        %627 = vmatpush1.bf16.msra.mxu0 %v604
        %628 = vmatprep.subr.bf16.mxu0 0
        %629 = vmatpush1.bf16.msra.mxu0 %v605
        %630 = vmatprep.subr.bf16.mxu0 0
        %631 = vmatpush1.bf16.msra.mxu0 0
        %632 = vmatprep.subr.bf16.mxu0 0
        %633 = vmatpush1.bf16.msra.mxu0 0
        %634 = vmatprep.subr.bf16.mxu0 0
        %635 = vmatpush1.bf16.msra.mxu0 0
        %636 = vmatprep.subr.bf16.mxu0 0
        %637 = vmatpush1.bf16.msra.mxu0 0
        %638 = vmatprep.subr.bf16.mxu0 0
        %639 = vmatpush1.bf16.msra.mxu0 0
        %640 = vmatprep.subr.bf16.mxu0 0
        %641 = vmatpush1.bf16.msra.mxu0 0
        %642 = vmatprep.subr.bf16.mxu0 0
        %643 = vmatpush1.bf16.msra.mxu0 0
        %644 = vmatprep.subr.bf16.mxu0 0
        %645 = vmatpush1.bf16.msra.mxu0 0
        %646 = vmatprep.mubr.bf16.mxu0 0
        %647 = vmatmul.mubr.bf16.gmra.mrb[0].mxu0 %v535
        %v648 = vpop.f32.mrb[0].mxu0
        %v649 = vadd.f32 %v564, %v648
        %v650 = vpop.f32.mrb[0].mxu0
        %v651 = vpop.f32.mrb[0].mxu0
        %v652 = vadd.f32 %v564, %v651
        %v653 = vpop.f32.mrb[0].mxu0
        %654 = vmatprep.mubr.bf16.mxu0 0
        %655 = vmatmul.mubr.bf16.gmra.mrb[0].mxu0 %v536
        %v656 = vpop.f32.mrb[0].mxu0
        %v657 = vadd.f32 %v564, %v656
        %v658 = vpop.f32.mrb[0].mxu0
        %v659 = vpop.f32.mrb[0].mxu0
        %v660 = vadd.f32 %v564, %v659
        %v661 = vpop.f32.mrb[0].mxu0
        %662 = vmatprep.mubr.bf16.mxu0 0
        %663 = vmatmul.mubr.bf16.gmra.mrb[0].mxu0 %v537
        %v664 = vpop.f32.mrb[0].mxu0
        %v665 = vadd.f32 %v564, %v664
        %v666 = vpop.f32.mrb[0].mxu0
        %v667 = vpop.f32.mrb[0].mxu0
        %v668 = vadd.f32 %v564, %v667
        %v669 = vpop.f32.mrb[0].mxu0
        %670 = vmatprep.mubr.bf16.mxu0 0
        %671 = vmatmul.mubr.bf16.gmra.mrb[0].mxu0 %v538
        %v672 = vpop.f32.mrb[0].mxu0
        %v673 = vadd.f32 %v564, %v672
        %v674 = vpop.f32.mrb[0].mxu0
        %v675 = vpop.f32.mrb[0].mxu0
        %v676 = vadd.f32 %v564, %v675
        %v677 = vpop.f32.mrb[0].mxu0
        %678 = vmatprep.mubr.bf16.mxu0 0
        %679 = vmatmul.mubr.bf16.gmra.mrb[0].mxu0 %v539
        %v680 = vpop.f32.mrb[0].mxu0
        %v681 = vadd.f32 %v564, %v680
        %v682 = vpop.f32.mrb[0].mxu0
        %v683 = vpop.f32.mrb[0].mxu0
        %v684 = vadd.f32 %v564, %v683
        %v685 = vpop.f32.mrb[0].mxu0
        %686 = vmatprep.mubr.bf16.mxu0 0
        %687 = vmatmul.mubr.bf16.gmra.mrb[0].mxu0 %v540
        %v688 = vpop.f32.mrb[0].mxu0
        %v689 = vadd.f32 %v564, %v688
        %v690 = vpop.f32.mrb[0].mxu0
        %v691 = vpop.f32.mrb[0].mxu0
        %v692 = vadd.f32 %v564, %v691
        %v693 = vpop.f32.mrb[0].mxu0
        %694 = vmatprep.mubr.bf16.mxu0 0
        %695 = vmatmul.mubr.bf16.gmra.mrb[0].mxu0 %v541
        %v696 = vpop.f32.mrb[0].mxu0
        %v697 = vadd.f32 %v564, %v696
        %v698 = vpop.f32.mrb[0].mxu0
        %v699 = vpop.f32.mrb[0].mxu0
        %v700 = vadd.f32 %v564, %v699
        %v701 = vpop.f32.mrb[0].mxu0
        %702 = vmatprep.mubr.bf16.mxu0 0
        %703 = vmatmul.mubr.bf16.gmra.mrb[0].mxu0 %v542
        %v704 = vpop.f32.mrb[0].mxu0
        %v705 = vadd.f32 %v564, %v704
        %v706 = vpop.f32.mrb[0].mxu0
        %v707 = vpop.f32.mrb[0].mxu0
        %v708 = vadd.f32 %v564, %v707
        %v709 = vpop.f32.mrb[0].mxu0
        %710 = vdwg.mxu0
        %v711 = vmul.f32 %v649, 0.2
        %v712 = vmul.f32 %v652, 0.2
        %v713 = vmul.f32 %v657, 0.2
        %v714 = vmul.f32 %v660, 0.2
        %v715 = vmul.f32 %v665, 0.2
        %v716 = vmul.f32 %v668, 0.2
        %v717 = vmul.f32 %v673, 0.2
        %v718 = vmul.f32 %v676, 0.2
        %v719 = vmul.f32 %v681, 0.2
        %v720 = vmul.f32 %v684, 0.2
        %v721 = vmul.f32 %v689, 0.2
        %v722 = vmul.f32 %v692, 0.2
        %v723 = vmul.f32 %v697, 0.2
        %v724 = vmul.f32 %v700, 0.2
        %v725 = vmul.f32 %v705, 0.2
        %v726 = vmul.f32 %v708, 0.2
        %v727 = vmax.f32 %v649, %v711
        %v728 = vmax.f32 %v652, %v712
        %v729 = vmax.f32 %v657, %v713
        %v730 = vmax.f32 %v660, %v714
        %v731 = vmax.f32 %v665, %v715
        %v732 = vmax.f32 %v668, %v716
        %v733 = vmax.f32 %v673, %v717
        %v734 = vmax.f32 %v676, %v718
        %v735 = vmax.f32 %v681, %v719
        %v736 = vmax.f32 %v684, %v720
        %v737 = vmax.f32 %v689, %v721
        %v738 = vmax.f32 %v692, %v722
        %v739 = vmax.f32 %v697, %v723
        %v740 = vmax.f32 %v700, %v724
        %v741 = vmax.f32 %v705, %v725
        %v742 = vmax.f32 %v708, %v726
        %v743 = vpack.c.bf16 %v728, %v727
        %v744 = vpack.c.bf16 %v730, %v729
        %v745 = vpack.c.bf16 %v732, %v731
        %v746 = vpack.c.bf16 %v734, %v733
        %v747 = vpack.c.bf16 %v736, %v735
        %v748 = vpack.c.bf16 %v738, %v737
        %v749 = vpack.c.bf16 %v740, %v739
        %v750 = vpack.c.bf16 %v742, %v741
        %v751 = vld [vmem:[%s5] sm:$0xf]
        %v752 = vld [vmem:[%s5 + $0x4] sm:$0xf]
        %v753 = vld [vmem:[%s5 + $0x8] sm:$0xf]
        %v754 = vld [vmem:[%s5 + $0xc] sm:$0xf]
        %v755 = vld [vmem:[%s5 + $0x10] sm:$0xf]
        %v756 = vld [vmem:[%s5 + $0x14] sm:$0xf]
        %v757 = vld [vmem:[%s5 + $0x18] sm:$0xf]
        %v758 = vld [vmem:[%s5 + $0x1c] sm:$0xf]
        %v759 = vld [vmem:[%s5 + $0x20] sm:$0xf]
        %v760 = vld [vmem:[%s5 + $0x24] sm:$0xf]
        %v761 = vld [vmem:[%s5 + $0x28] sm:$0xf]
        %v762 = vld [vmem:[%s5 + $0x2c] sm:$0xf]
        %v763 = vld [vmem:[%s5 + $0x30] sm:$0xf]
        %v764 = vld [vmem:[%s5 + $0x34] sm:$0xf]
        %v765 = vld [vmem:[%s5 + $0x38] sm:$0xf]
        %v766 = vld [vmem:[%s5 + $0x3c] sm:$0xf]
        %v767 = vld [vmem:[%s6] sm:$0x1]
        %v769 = vlaneseq
        %v770 = vshrl.u32 %v769, 7
        %v771 = vsub.s32 0, %v770
        %v772 = vrot.slane %v767, %v771
        %v790 = vunpack.c.l.b16 %v751
        %v791 = vunpack.c.l.b16 %v752
        %v792 = vunpack.c.l.b16 %v753
        %v793 = vunpack.c.l.b16 %v754
        %v794 = vunpack.c.l.b16 %v755
        %v795 = vunpack.c.l.b16 %v756
        %v796 = vunpack.c.l.b16 %v757
        %v797 = vunpack.c.l.b16 %v758
        %v798 = vunpack.c.l.b16 %v759
        %v799 = vunpack.c.l.b16 %v760
        %v800 = vunpack.c.l.b16 %v761
        %v801 = vunpack.c.l.b16 %v762
        %v802 = vunpack.c.l.b16 %v763
        %v803 = vunpack.c.l.b16 %v764
        %v804 = vunpack.c.l.b16 %v765
        %v805 = vunpack.c.l.b16 %v766
        %v806 = vpack.c.b16 %v791, %v790
        %v807 = vpack.c.b16 %v793, %v792
        %v808 = vpack.c.b16 %v795, %v794
        %v809 = vpack.c.b16 %v797, %v796
        %v810 = vpack.c.b16 %v799, %v798
        %v811 = vpack.c.b16 %v801, %v800
        %v812 = vpack.c.b16 %v803, %v802
        %v813 = vpack.c.b16 %v805, %v804
        %822 = vmatprep.subr.bf16.mxu0 0
        %823 = vmatpush1.bf16.msra.mxu0 %v806
        %824 = vmatprep.subr.bf16.mxu0 0
        %825 = vmatpush1.bf16.msra.mxu0 %v807
        %826 = vmatprep.subr.bf16.mxu0 0
        %827 = vmatpush1.bf16.msra.mxu0 %v808
        %828 = vmatprep.subr.bf16.mxu0 0
        %829 = vmatpush1.bf16.msra.mxu0 %v809
        %830 = vmatprep.subr.bf16.mxu0 0
        %831 = vmatpush1.bf16.msra.mxu0 %v810
        %832 = vmatprep.subr.bf16.mxu0 0
        %833 = vmatpush1.bf16.msra.mxu0 %v811
        %834 = vmatprep.subr.bf16.mxu0 0
        %835 = vmatpush1.bf16.msra.mxu0 %v812
        %836 = vmatprep.subr.bf16.mxu0 0
        %837 = vmatpush1.bf16.msra.mxu0 %v813
        %838 = vmatprep.subr.bf16.mxu0 0
        %839 = vmatpush1.bf16.msra.mxu0 0
        %840 = vmatprep.subr.bf16.mxu0 0
        %841 = vmatpush1.bf16.msra.mxu0 0
        %842 = vmatprep.subr.bf16.mxu0 0
        %843 = vmatpush1.bf16.msra.mxu0 0
        %844 = vmatprep.subr.bf16.mxu0 0
        %845 = vmatpush1.bf16.msra.mxu0 0
        %846 = vmatprep.subr.bf16.mxu0 0
        %847 = vmatpush1.bf16.msra.mxu0 0
        %848 = vmatprep.subr.bf16.mxu0 0
        %849 = vmatpush1.bf16.msra.mxu0 0
        %850 = vmatprep.subr.bf16.mxu0 0
        %851 = vmatpush1.bf16.msra.mxu0 0
        %852 = vmatprep.subr.bf16.mxu0 0
        %853 = vmatpush1.bf16.msra.mxu0 0
        %854 = vmatprep.mubr.bf16.mxu0 0
        %855 = vmatmul.mubr.bf16.gmra.mrb[0].mxu0 %v743
        %v856 = vpop.f32.mrb[0].mxu0
        %v857 = vadd.f32 %v772, %v856
        %v858 = vpop.f32.mrb[0].mxu0
        %v859 = vpop.f32.mrb[0].mxu0
        %v860 = vadd.f32 %v772, %v859
        %v861 = vpop.f32.mrb[0].mxu0
        %862 = vmatprep.mubr.bf16.mxu0 0
        %863 = vmatmul.mubr.bf16.gmra.mrb[0].mxu0 %v744
        %v864 = vpop.f32.mrb[0].mxu0
        %v865 = vadd.f32 %v772, %v864
        %v866 = vpop.f32.mrb[0].mxu0
        %v867 = vpop.f32.mrb[0].mxu0
        %v868 = vadd.f32 %v772, %v867
        %v869 = vpop.f32.mrb[0].mxu0
        %870 = vmatprep.mubr.bf16.mxu0 0
        %871 = vmatmul.mubr.bf16.gmra.mrb[0].mxu0 %v745
        %v872 = vpop.f32.mrb[0].mxu0
        %v873 = vadd.f32 %v772, %v872
        %v874 = vpop.f32.mrb[0].mxu0
        %v875 = vpop.f32.mrb[0].mxu0
        %v876 = vadd.f32 %v772, %v875
        %v877 = vpop.f32.mrb[0].mxu0
        %878 = vmatprep.mubr.bf16.mxu0 0
        %879 = vmatmul.mubr.bf16.gmra.mrb[0].mxu0 %v746
        %v880 = vpop.f32.mrb[0].mxu0
        %v881 = vadd.f32 %v772, %v880
        %v882 = vpop.f32.mrb[0].mxu0
        %v883 = vpop.f32.mrb[0].mxu0
        %v884 = vadd.f32 %v772, %v883
        %v885 = vpop.f32.mrb[0].mxu0
        %886 = vmatprep.mubr.bf16.mxu0 0
        %887 = vmatmul.mubr.bf16.gmra.mrb[0].mxu0 %v747
        %v888 = vpop.f32.mrb[0].mxu0
        %v889 = vadd.f32 %v772, %v888
        %v890 = vpop.f32.mrb[0].mxu0
        %v891 = vpop.f32.mrb[0].mxu0
        %v892 = vadd.f32 %v772, %v891
        %v893 = vpop.f32.mrb[0].mxu0
        %894 = vmatprep.mubr.bf16.mxu0 0
        %895 = vmatmul.mubr.bf16.gmra.mrb[0].mxu0 %v748
        %v896 = vpop.f32.mrb[0].mxu0
        %v897 = vadd.f32 %v772, %v896
        %v898 = vpop.f32.mrb[0].mxu0
        %v899 = vpop.f32.mrb[0].mxu0
        %v900 = vadd.f32 %v772, %v899
        %v901 = vpop.f32.mrb[0].mxu0
        %902 = vmatprep.mubr.bf16.mxu0 0
        %903 = vmatmul.mubr.bf16.gmra.mrb[0].mxu0 %v749
        %v904 = vpop.f32.mrb[0].mxu0
        %v905 = vadd.f32 %v772, %v904
        %v906 = vpop.f32.mrb[0].mxu0
        %v907 = vpop.f32.mrb[0].mxu0
        %v908 = vadd.f32 %v772, %v907
        %v909 = vpop.f32.mrb[0].mxu0
        %910 = vmatprep.mubr.bf16.mxu0 0
        %911 = vmatmul.mubr.bf16.gmra.mrb[0].mxu0 %v750
        %v912 = vpop.f32.mrb[0].mxu0
        %v913 = vadd.f32 %v772, %v912
        %v914 = vpop.f32.mrb[0].mxu0
        %v915 = vpop.f32.mrb[0].mxu0
        %v916 = vadd.f32 %v772, %v915
        %v917 = vpop.f32.mrb[0].mxu0
        %918 = vdwg.mxu0
        %v919 = vmul.f32 %v857, 0.2
        %v920 = vmul.f32 %v860, 0.2
        %v921 = vmul.f32 %v865, 0.2
        %v922 = vmul.f32 %v868, 0.2
        %v923 = vmul.f32 %v873, 0.2
        %v924 = vmul.f32 %v876, 0.2
        %v925 = vmul.f32 %v881, 0.2
        %v926 = vmul.f32 %v884, 0.2
        %v927 = vmul.f32 %v889, 0.2
        %v928 = vmul.f32 %v892, 0.2
        %v929 = vmul.f32 %v897, 0.2
        %v930 = vmul.f32 %v900, 0.2
        %v931 = vmul.f32 %v905, 0.2
        %v932 = vmul.f32 %v908, 0.2
        %v933 = vmul.f32 %v913, 0.2
        %v934 = vmul.f32 %v916, 0.2
        %v935 = vmax.f32 %v857, %v919
        %v936 = vmax.f32 %v860, %v920
        %v937 = vmax.f32 %v865, %v921
        %v938 = vmax.f32 %v868, %v922
        %v939 = vmax.f32 %v873, %v923
        %v940 = vmax.f32 %v876, %v924
        %v941 = vmax.f32 %v881, %v925
        %v942 = vmax.f32 %v884, %v926
        %v943 = vmax.f32 %v889, %v927
        %v944 = vmax.f32 %v892, %v928
        %v945 = vmax.f32 %v897, %v929
        %v946 = vmax.f32 %v900, %v930
        %v947 = vmax.f32 %v905, %v931
        %v948 = vmax.f32 %v908, %v932
        %v949 = vmax.f32 %v913, %v933
        %v950 = vmax.f32 %v916, %v934
        %v951 = vld [vmem:[%s7] sm:$0xf]
        %v952 = vpack.c.bf16 %v936, %v935
        %v953 = vpack.c.bf16 %v938, %v937
        %v954 = vpack.c.bf16 %v940, %v939
        %v955 = vpack.c.bf16 %v942, %v941
        %v956 = vpack.c.bf16 %v944, %v943
        %v957 = vpack.c.bf16 %v946, %v945
        %v958 = vpack.c.bf16 %v948, %v947
        %v959 = vpack.c.bf16 %v950, %v949
        %960 = vmatprep.subr.bf16.mxu0 0
        %961 = vmatpush1.bf16.xpose.msra.mxu0 %v952
        %962 = vmatprep.subr.bf16.mxu0 0
        %963 = vmatpush1.bf16.xpose.msra.mxu0 %v953
        %964 = vmatprep.subr.bf16.mxu0 0
        %965 = vmatpush1.bf16.xpose.msra.mxu0 %v954
        %966 = vmatprep.subr.bf16.mxu0 0
        %967 = vmatpush1.bf16.xpose.msra.mxu0 %v955
        %968 = vmatprep.subr.bf16.mxu0 0
        %969 = vmatpush1.bf16.xpose.msra.mxu0 %v956
        %970 = vmatprep.subr.bf16.mxu0 0
        %971 = vmatpush1.bf16.xpose.msra.mxu0 %v957
        %972 = vmatprep.subr.bf16.mxu0 0
        %973 = vmatpush1.bf16.xpose.msra.mxu0 %v958
        %974 = vmatprep.subr.bf16.mxu0 0
        %975 = vmatpush1.bf16.xpose.msra.mxu0 %v959
        %976 = vmatprep.subr.bf16.mxu0 0
        %977 = vmatpush1.bf16.xpose.msra.mxu0 0
        %978 = vmatprep.subr.bf16.mxu0 0
        %979 = vmatpush1.bf16.xpose.msra.mxu0 0
        %980 = vmatprep.subr.bf16.mxu0 0
        %981 = vmatpush1.bf16.xpose.msra.mxu0 0
        %982 = vmatprep.subr.bf16.mxu0 0
        %983 = vmatpush1.bf16.xpose.msra.mxu0 0
        %984 = vmatprep.subr.bf16.mxu0 0
        %985 = vmatpush1.bf16.xpose.msra.mxu0 0
        %986 = vmatprep.subr.bf16.mxu0 0
        %987 = vmatpush1.bf16.xpose.msra.mxu0 0
        %988 = vmatprep.subr.bf16.mxu0 0
        %989 = vmatpush1.bf16.xpose.msra.mxu0 0
        %990 = vmatprep.subr.bf16.mxu0 0
        %991 = vmatpush1.bf16.xpose.msra.mxu0 0
        %992 = vmatprep.mubr.bf16.mxu0 0
        %993 = vmatmul.mubr.bf16.gmra.mrb[0].mxu0 %v951
        %v994 = vpop.f32.mrb[0].mxu0
        %v995 = vadd.f32 0.0, %v994
        %v996 = vpop.f32.mrb[0].mxu0
        %v997 = vpop.f32.mrb[0].mxu0
        %v998 = vpop.f32.mrb[0].mxu0
        %999 = vdwg.mxu0
        %s1000 = sld [smem:[#allocation2]]
        %v1001 = vstv %s1000
        %v1002 = vadd.f32 %v995, %v1001
        %v1003 = vsub.f32 0.0, %v1002
        %v1004 = vmul.f32 %v1003, 1.442695
        %v1005 = vpow.pop %v1004
        %v1006 = vadd.f32 %v1005, 1.0
        %v1007 = vrcp.pop %v1006
        %v1008 = vmax.f32 %v1007, 0.0
        %v1009 = vmin.f32 %v1008, 1.0
        %1010 = vst [vmem:[%s326] sm:$0x1] %v1009
        %s1011 = sand.u32 %s226, 1
        %s1012 = scalar_lea.sflag [#allocation4], %s1011
        %s1013 = sand.u32 %s226, 1
        %s1014 = scalar_lea.vmem [#allocation3], %s1013
        // Predicated region
        $region57: #{tpu_custom_call.1} parent=55 // pred_check
          %p1015 = pneg %p236
        $region58: #{tpu_custom_call.1} parent=55 // pred_check_branch
          %1017 = sbr.rel (%p1015) target = $region60
        $region59: #{tpu_custom_call.1} parent=55 // pred_region
          %s1019 = ssub.s32 16, 16
          %1020 = vsyncadd %s1012, %s1019
          %s1021 = smul.addr %s24, 16
          %s1022 = scalar_lea.hbm %s9, %s1021
          %s1024 = sshll.u32 %s1014, 4
          %s1025 = int_to_ptr.vmem [resolvable:$true] %s1024
          %1027 = dma.vmem_to_hbm [thread:$0]  %s1025, 16, %s1022, %s1012
        $region60: #{tpu_custom_call.1} parent=55 // pred_fallthru
          _
      $region56: #{tpu_custom_call.1} parent=5 // pred_fallthru
        _
      %p1028 = scmp.le.s32.totalorder 2, %s19
      // Predicated region
      $region61: #{tpu_custom_call.1} parent=5 // pred_check
        %p1029 = pneg %p1028
      $region62: #{tpu_custom_call.1} parent=5 // pred_check_branch
        %1031 = sbr.rel (%p1029) target = $region64
      $region63: #{tpu_custom_call.1} parent=5 // pred_region
        %s1032 = ssub.s32 %s19, 2
        // Predicated region
        $region65: #{tpu_custom_call.1} parent=63 // pred_check
          %p1033 = pneg %p242
        $region66: #{tpu_custom_call.1} parent=63 // pred_check_branch
          %1035 = sbr.rel (%p1033) target = $region68
        $region67: #{tpu_custom_call.1} parent=63 // pred_region
          %s1036 = sand.u32 %s227, 1
          %s1037 = scalar_lea.sflag [#allocation4], %s1036
          %s1038 = sand.u32 %s227, 1
          %s1039 = scalar_lea.vmem [#allocation3], %s1038
          %1040 = dma.done %s1037, 16
        $region68: #{tpu_custom_call.1} parent=63 // pred_fallthru
          _
      $region64: #{tpu_custom_call.1} parent=5 // pred_fallthru
        _
    $region6: #{tpu_custom_call.1} parent=1 // loop_footer
      %s23 = sadd.s32 1, %s19
    $region7: #{tpu_custom_call.1} parent=1 // loop_footer_branch
      %18 = sbr.rel target = $region3
    $region8: #{tpu_custom_call.1} parent=1 // loop_exit
      _
    %1041 = vsyncpa [#allocation4], 1
    %s1042 = scalar_lea.sflag [#allocation4], 1
    %1043 = vsyncpa %s1042, 1

</llo_original>
